<compile_context>
chip_gen: v6e
topology: v6e:2x2x1
jax: 0.10.0
libtpu: 0.0.40
codegen_flags: <defaults>
</compile_context>

<pallas_src>
import math

import jax
import jax.numpy as jnp
from jax.experimental import pallas as pl
from jax.experimental.pallas import tpu as pltpu

PI = math.pi
TWO_PI = 2.0 * math.pi
INV_TWO_PI = 1.0 / TWO_PI
HIDDEN = 10
LANES = 128


def _round_up(a, b):
    return ((a + b - 1) // b) * b


def mlp_kernel(params_ref, x_ref, o_ref):
    """params_ref: SMEM f32[31] = [w1(10) | b1(10) | w2(10) | b2(1)].
    x_ref / o_ref: VMEM f32[tile_rows, 128] lane-dense element slabs."""
    x = x_ref[...]

    # ---- range reduction: while x < -pi: x += 2pi ; while x > pi: x -= 2pi ----
    in_range = jnp.abs(x) <= PI                       # 1 abs + 1 cmp
    k = jnp.floor((x + PI) * INV_TWO_PI)
    wrapped = x - TWO_PI * k
    # torch while-loop stops exactly at +pi; fold the boundary fix into a single
    # correction select (x = pi + 2*pi*k rounds to wrapped == -pi otherwise).
    fix = jnp.where(jnp.logical_and(x > PI, wrapped <= -PI), TWO_PI, 0.0)
    xr = jnp.where(in_range, x, wrapped + fix)

    # ---- Linear(1->10) + tanh + Linear(10->1), as unrolled per-element FMAs ----
    # Seed the accumulator with b2 (saves a zeros init + trailing add).
    acc = jnp.full_like(xr, params_ref[3 * HIDDEN])
    for j in range(HIDDEN):  # static unroll: 10 FMA + 10 tanh (EUP) + 10 FMA
        w1j = params_ref[j]
        b1j = params_ref[HIDDEN + j]
        w2j = params_ref[2 * HIDDEN + j]
        acc = acc + jnp.tanh(xr * w1j + b1j) * w2j
    o_ref[...] = acc


def neural_network_forward(x, w1, b1, w2, b2, *, tile_rows=2048):
    """x: [N, 1] f32 -> [N, 1] f32. Full forward pass in one gridded Pallas kernel."""
    n = x.shape[0]

    # lane-dense slab: flatten N elements into (rows, 128)
    rows = pl.cdiv(max(n, 1), LANES)
    rows8 = _round_up(rows, 8)                 # sublane granularity

    # Choose steps first, then tile size: keeps padding waste bounded by ~one
    # small tile and guarantees >= 2 grid steps (v7x megacore) when possible.
    n_steps = max(1, pl.cdiv(rows8, tile_rows))
    if rows8 > 8:
        n_steps = max(n_steps, 2)
    tr = _round_up(pl.cdiv(rows8, n_steps), 8)
    rows_padded = _round_up(rows8, tr)
    total = rows_padded * LANES

    x_flat = x.reshape(-1).astype(jnp.float32)
    if total != n:                             # skip the pad pass when aligned
        x_flat = jnp.pad(x_flat, (0, total - n))
    x_slab = x_flat.reshape(rows_padded, LANES)

    # 31 parameters packed into a single SMEM-resident vector
    params = jnp.concatenate(
        [w1.reshape(-1), b1.reshape(-1), w2.reshape(-1), b2.reshape(-1)]
    ).astype(jnp.float32)

    grid = (rows_padded // tr,)
    out_slab = pl.pallas_call(
        mlp_kernel,
        out_shape=jax.ShapeDtypeStruct((rows_padded, LANES), jnp.float32),
        grid=grid,
        in_specs=[
            pl.BlockSpec(memory_space=pltpu.MemorySpace.SMEM),   # params: scalars
            pl.BlockSpec((tr, LANES), lambda i: (i, 0)),          # x tile
        ],
        out_specs=pl.BlockSpec((tr, LANES), lambda i: (i, 0)),
        compiler_params=pltpu.CompilerParams(
            dimension_semantics=("parallel",),
        ),
    )(params, x_slab)

    out_flat = out_slab.reshape(-1)
    if total != n:                             # skip the slice pass when aligned
        out_flat = out_flat[:n]
    return out_flat.reshape(n, 1)


def init_params(key):
    """Params matching nn.Linear(1,10) / nn.Linear(10,1) (stored transposed)."""
    k1, k2, k3, k4 = jax.random.split(key, 4)
    bound1 = 1.0 / math.sqrt(1.0)
    bound2 = 1.0 / math.sqrt(10.0)
    w1 = jax.random.uniform(k1, (1, HIDDEN), jnp.float32, -bound1, bound1)
    b1 = jax.random.uniform(k2, (HIDDEN,), jnp.float32, -bound1, bound1)
    w2 = jax.random.uniform(k3, (HIDDEN, 1), jnp.float32, -bound2, bound2)
    b2 = jax.random.uniform(k4, (1,), jnp.float32, -bound2, bound2)
    return w1, b1, w2, b2


def reference_forward(x, w1, b1, w2, b2):
    """Pure-JAX reference mirroring the PyTorch forward semantics."""
    in_range = jnp.abs(x) <= PI
    wrapped = x - TWO_PI * jnp.floor((x + PI) * INV_TWO_PI)
    wrapped = jnp.where(jnp.logical_and(x > PI, wrapped <= -PI), wrapped + TWO_PI, wrapped)
    xr = jnp.where(in_range, x, wrapped)
    h = jnp.tanh(xr @ w1 + b1)
    return h @ w2 + b2


if __name__ == "__main__":
    key = jax.random.PRNGKey(0)
    kx, kp = jax.random.split(key)

    # N deliberately NOT a multiple of 128 / tile size to exercise pad + unpad,
    # with values spread well outside [-pi, pi] so the wrapping path is hit.
    N = 300
    x = jax.random.uniform(kx, (N, 1), jnp.float32, -10.0, 10.0)

    w1, b1, w2, b2 = init_params(kp)

    out = neural_network_forward(x, w1, b1, w2, b2)
    out = jax.block_until_ready(out)

    ref = reference_forward(x, w1, b1, w2, b2)
    assert out.shape == (N, 1)
    assert jnp.allclose(out, ref, atol=1e-5, rtol=1e-5), (out, ref)

    print("KERNEL_OK")
</pallas_src>

<mosaic_0001>
module attributes {stable_mosaic.version = 11 : i64} {
  func.func @mlp_kernel(%arg0: i32, %arg1: memref<31xf32, #tpu.memory_space<smem>>, %arg2: memref<8x128xf32, #tpu.memory_space<vmem>>, %arg3: memref<8x128xf32, #tpu.memory_space<vmem>>) attributes {dimension_semantics = [#tpu.dimension_semantics<parallel>], iteration_bounds = array<i64: 1>, scalar_prefetch = 0 : i64, scratch_operands = 0 : i64, tpu.core_type = #tpu.core_type<tc>, window_params = [{transform_indices = @transform_0, window_bounds = array<i64: 31>}, {transform_indices = @transform_1, window_bounds = array<i64: 8, 128>}, {transform_indices = @transform_2, window_bounds = array<i64: 8, 128>}]} {
    %c0 = arith.constant 0 : index
    %c0_0 = arith.constant 0 : index
    %0 = vector.load %arg2[%c0, %c0_0] : memref<8x128xf32, #tpu.memory_space<vmem>>, vector<8x128xf32>
    %1 = math.absf %0 : vector<8x128xf32>
    %cst = arith.constant 3.14159274 : f32
    %2 = vector.broadcast %cst : f32 to vector<8x128xf32>
    %3 = arith.cmpf ole, %1, %2 : vector<8x128xf32>
    %cst_1 = arith.constant 3.14159274 : f32
    %4 = vector.broadcast %cst_1 : f32 to vector<8x128xf32>
    %5 = arith.addf %0, %4 : vector<8x128xf32>
    %cst_2 = arith.constant 0.159154937 : f32
    %6 = vector.broadcast %cst_2 : f32 to vector<8x128xf32>
    %7 = arith.mulf %5, %6 : vector<8x128xf32>
    %8 = math.floor %7 : vector<8x128xf32>
    %cst_3 = arith.constant 6.28318548 : f32
    %9 = vector.broadcast %cst_3 : f32 to vector<8x128xf32>
    %10 = arith.mulf %9, %8 : vector<8x128xf32>
    %11 = arith.subf %0, %10 : vector<8x128xf32>
    %cst_4 = arith.constant 3.14159274 : f32
    %12 = vector.broadcast %cst_4 : f32 to vector<8x128xf32>
    %13 = arith.cmpf ogt, %0, %12 : vector<8x128xf32>
    %cst_5 = arith.constant -3.14159274 : f32
    %14 = vector.broadcast %cst_5 : f32 to vector<8x128xf32>
    %15 = arith.cmpf ole, %11, %14 : vector<8x128xf32>
    %16 = arith.andi %13, %15 : vector<8x128xi1>
    %cst_6 = arith.constant 6.28318548 : f32
    %cst_7 = arith.constant 0.000000e+00 : f32
    %17 = vector.broadcast %cst_6 : f32 to vector<8x128xf32>
    %18 = vector.broadcast %cst_7 : f32 to vector<8x128xf32>
    %19 = arith.select %16, %17, %18 : vector<8x128xi1>, vector<8x128xf32>
    %20 = arith.addf %11, %19 : vector<8x128xf32>
    %21 = arith.select %3, %0, %20 : vector<8x128xi1>, vector<8x128xf32>
    %c30 = arith.constant 30 : index
    %22 = memref.load %arg1[%c30] : memref<31xf32, #tpu.memory_space<smem>>
    %23 = vector.broadcast %22 : f32 to vector<8x128xf32>
    %c0_8 = arith.constant 0 : index
    %24 = memref.load %arg1[%c0_8] : memref<31xf32, #tpu.memory_space<smem>>
    %c10 = arith.constant 10 : index
    %25 = memref.load %arg1[%c10] : memref<31xf32, #tpu.memory_space<smem>>
    %c20 = arith.constant 20 : index
    %26 = memref.load %arg1[%c20] : memref<31xf32, #tpu.memory_space<smem>>
    %27 = vector.broadcast %24 : f32 to vector<8x128xf32>
    %28 = arith.mulf %21, %27 : vector<8x128xf32>
    %29 = vector.broadcast %25 : f32 to vector<8x128xf32>
    %30 = arith.addf %28, %29 : vector<8x128xf32>
    %31 = math.tanh %30 : vector<8x128xf32>
    %32 = vector.broadcast %26 : f32 to vector<8x128xf32>
    %33 = arith.mulf %31, %32 : vector<8x128xf32>
    %34 = arith.addf %23, %33 : vector<8x128xf32>
    %c1 = arith.constant 1 : index
    %35 = memref.load %arg1[%c1] : memref<31xf32, #tpu.memory_space<smem>>
    %c11 = arith.constant 11 : index
    %36 = memref.load %arg1[%c11] : memref<31xf32, #tpu.memory_space<smem>>
    %c21 = arith.constant 21 : index
    %37 = memref.load %arg1[%c21] : memref<31xf32, #tpu.memory_space<smem>>
    %38 = vector.broadcast %35 : f32 to vector<8x128xf32>
    %39 = arith.mulf %21, %38 : vector<8x128xf32>
    %40 = vector.broadcast %36 : f32 to vector<8x128xf32>
    %41 = arith.addf %39, %40 : vector<8x128xf32>
    %42 = math.tanh %41 : vector<8x128xf32>
    %43 = vector.broadcast %37 : f32 to vector<8x128xf32>
    %44 = arith.mulf %42, %43 : vector<8x128xf32>
    %45 = arith.addf %34, %44 : vector<8x128xf32>
    %c2 = arith.constant 2 : index
    %46 = memref.load %arg1[%c2] : memref<31xf32, #tpu.memory_space<smem>>
    %c12 = arith.constant 12 : index
    %47 = memref.load %arg1[%c12] : memref<31xf32, #tpu.memory_space<smem>>
    %c22 = arith.constant 22 : index
    %48 = memref.load %arg1[%c22] : memref<31xf32, #tpu.memory_space<smem>>
    %49 = vector.broadcast %46 : f32 to vector<8x128xf32>
    %50 = arith.mulf %21, %49 : vector<8x128xf32>
    %51 = vector.broadcast %47 : f32 to vector<8x128xf32>
    %52 = arith.addf %50, %51 : vector<8x128xf32>
    %53 = math.tanh %52 : vector<8x128xf32>
    %54 = vector.broadcast %48 : f32 to vector<8x128xf32>
    %55 = arith.mulf %53, %54 : vector<8x128xf32>
    %56 = arith.addf %45, %55 : vector<8x128xf32>
    %c3 = arith.constant 3 : index
    %57 = memref.load %arg1[%c3] : memref<31xf32, #tpu.memory_space<smem>>
    %c13 = arith.constant 13 : index
    %58 = memref.load %arg1[%c13] : memref<31xf32, #tpu.memory_space<smem>>
    %c23 = arith.constant 23 : index
    %59 = memref.load %arg1[%c23] : memref<31xf32, #tpu.memory_space<smem>>
    %60 = vector.broadcast %57 : f32 to vector<8x128xf32>
    %61 = arith.mulf %21, %60 : vector<8x128xf32>
    %62 = vector.broadcast %58 : f32 to vector<8x128xf32>
    %63 = arith.addf %61, %62 : vector<8x128xf32>
    %64 = math.tanh %63 : vector<8x128xf32>
    %65 = vector.broadcast %59 : f32 to vector<8x128xf32>
    %66 = arith.mulf %64, %65 : vector<8x128xf32>
    %67 = arith.addf %56, %66 : vector<8x128xf32>
    %c4 = arith.constant 4 : index
    %68 = memref.load %arg1[%c4] : memref<31xf32, #tpu.memory_space<smem>>
    %c14 = arith.constant 14 : index
    %69 = memref.load %arg1[%c14] : memref<31xf32, #tpu.memory_space<smem>>
    %c24 = arith.constant 24 : index
    %70 = memref.load %arg1[%c24] : memref<31xf32, #tpu.memory_space<smem>>
    %71 = vector.broadcast %68 : f32 to vector<8x128xf32>
    %72 = arith.mulf %21, %71 : vector<8x128xf32>
    %73 = vector.broadcast %69 : f32 to vector<8x128xf32>
    %74 = arith.addf %72, %73 : vector<8x128xf32>
    %75 = math.tanh %74 : vector<8x128xf32>
    %76 = vector.broadcast %70 : f32 to vector<8x128xf32>
    %77 = arith.mulf %75, %76 : vector<8x128xf32>
    %78 = arith.addf %67, %77 : vector<8x128xf32>
    %c5 = arith.constant 5 : index
    %79 = memref.load %arg1[%c5] : memref<31xf32, #tpu.memory_space<smem>>
    %c15 = arith.constant 15 : index
    %80 = memref.load %arg1[%c15] : memref<31xf32, #tpu.memory_space<smem>>
    %c25 = arith.constant 25 : index
    %81 = memref.load %arg1[%c25] : memref<31xf32, #tpu.memory_space<smem>>
    %82 = vector.broadcast %79 : f32 to vector<8x128xf32>
    %83 = arith.mulf %21, %82 : vector<8x128xf32>
    %84 = vector.broadcast %80 : f32 to vector<8x128xf32>
    %85 = arith.addf %83, %84 : vector<8x128xf32>
    %86 = math.tanh %85 : vector<8x128xf32>
    %87 = vector.broadcast %81 : f32 to vector<8x128xf32>
    %88 = arith.mulf %86, %87 : vector<8x128xf32>
    %89 = arith.addf %78, %88 : vector<8x128xf32>
    %c6 = arith.constant 6 : index
    %90 = memref.load %arg1[%c6] : memref<31xf32, #tpu.memory_space<smem>>
    %c16 = arith.constant 16 : index
    %91 = memref.load %arg1[%c16] : memref<31xf32, #tpu.memory_space<smem>>
    %c26 = arith.constant 26 : index
    %92 = memref.load %arg1[%c26] : memref<31xf32, #tpu.memory_space<smem>>
    %93 = vector.broadcast %90 : f32 to vector<8x128xf32>
    %94 = arith.mulf %21, %93 : vector<8x128xf32>
    %95 = vector.broadcast %91 : f32 to vector<8x128xf32>
    %96 = arith.addf %94, %95 : vector<8x128xf32>
    %97 = math.tanh %96 : vector<8x128xf32>
    %98 = vector.broadcast %92 : f32 to vector<8x128xf32>
    %99 = arith.mulf %97, %98 : vector<8x128xf32>
    %100 = arith.addf %89, %99 : vector<8x128xf32>
    %c7 = arith.constant 7 : index
    %101 = memref.load %arg1[%c7] : memref<31xf32, #tpu.memory_space<smem>>
    %c17 = arith.constant 17 : index
    %102 = memref.load %arg1[%c17] : memref<31xf32, #tpu.memory_space<smem>>
    %c27 = arith.constant 27 : index
    %103 = memref.load %arg1[%c27] : memref<31xf32, #tpu.memory_space<smem>>
    %104 = vector.broadcast %101 : f32 to vector<8x128xf32>
    %105 = arith.mulf %21, %104 : vector<8x128xf32>
    %106 = vector.broadcast %102 : f32 to vector<8x128xf32>
    %107 = arith.addf %105, %106 : vector<8x128xf32>
    %108 = math.tanh %107 : vector<8x128xf32>
    %109 = vector.broadcast %103 : f32 to vector<8x128xf32>
    %110 = arith.mulf %108, %109 : vector<8x128xf32>
    %111 = arith.addf %100, %110 : vector<8x128xf32>
    %c8 = arith.constant 8 : index
    %112 = memref.load %arg1[%c8] : memref<31xf32, #tpu.memory_space<smem>>
    %c18 = arith.constant 18 : index
    %113 = memref.load %arg1[%c18] : memref<31xf32, #tpu.memory_space<smem>>
    %c28 = arith.constant 28 : index
    %114 = memref.load %arg1[%c28] : memref<31xf32, #tpu.memory_space<smem>>
    %115 = vector.broadcast %112 : f32 to vector<8x128xf32>
    %116 = arith.mulf %21, %115 : vector<8x128xf32>
    %117 = vector.broadcast %113 : f32 to vector<8x128xf32>
    %118 = arith.addf %116, %117 : vector<8x128xf32>
    %119 = math.tanh %118 : vector<8x128xf32>
    %120 = vector.broadcast %114 : f32 to vector<8x128xf32>
    %121 = arith.mulf %119, %120 : vector<8x128xf32>
    %122 = arith.addf %111, %121 : vector<8x128xf32>
    %c9 = arith.constant 9 : index
    %123 = memref.load %arg1[%c9] : memref<31xf32, #tpu.memory_space<smem>>
    %c19 = arith.constant 19 : index
    %124 = memref.load %arg1[%c19] : memref<31xf32, #tpu.memory_space<smem>>
    %c29 = arith.constant 29 : index
    %125 = memref.load %arg1[%c29] : memref<31xf32, #tpu.memory_space<smem>>
    %126 = vector.broadcast %123 : f32 to vector<8x128xf32>
    %127 = arith.mulf %21, %126 : vector<8x128xf32>
    %128 = vector.broadcast %124 : f32 to vector<8x128xf32>
    %129 = arith.addf %127, %128 : vector<8x128xf32>
    %130 = math.tanh %129 : vector<8x128xf32>
    %131 = vector.broadcast %125 : f32 to vector<8x128xf32>
    %132 = arith.mulf %130, %131 : vector<8x128xf32>
    %133 = arith.addf %122, %132 : vector<8x128xf32>
    %c0_9 = arith.constant 0 : index
    %c0_10 = arith.constant 0 : index
    %134 = vector.load %arg3[%c0_9, %c0_10] : memref<8x128xf32, #tpu.memory_space<vmem>>, vector<8x128xf32>
    tpu.vector_store %arg3[%c0_9, %c0_10], %133 {strides = array<i32>} : memref<8x128xf32, #tpu.memory_space<vmem>>, vector<8x128xf32>,
    return
  }
  func.func @transform_0(%arg0: i32) -> i32 {
    %c0_i32 = arith.constant 0 : i32
    %c0_i32_0 = arith.constant 0 : i32
    return %c0_i32 : i32
  }
  func.func @transform_1(%arg0: i32) -> (i32, i32) {
    %c0_i32 = arith.constant 0 : i32
    %c0_i32_0 = arith.constant 0 : i32
    return %arg0, %c0_i32 : i32, i32
  }
  func.func @transform_2(%arg0: i32) -> (i32, i32) {
    %c0_i32 = arith.constant 0 : i32
    %c0_i32_0 = arith.constant 0 : i32
    return %arg0, %c0_i32 : i32, i32
  }
}

</mosaic_0001>

<llo_original>
// kernel: tpu_custom_call.1
$region0: #{tpu_custom_call.1}
  #allocation0 [shape = 'u32[]', space=smem, size = 0x4, offset = 0x4, fixed_abs, tag = 'smem constant byte address 0x4 - core index']
  #allocation1 [shape = 'u32[144,128]{1,0:T(1,128)}', space=vmem, size = 0x12000, scoped, tag = 'internal scratch']
  %s0 = inlined_call_operand.hbm [shape: f32[31], index: 0, kind: input, shape index: {}]
  %s1 = inlined_call_operand.hbm [shape: f32[8,128], index: 1, kind: input, shape index: {}]
  %s2 = inlined_call_operand.hbm [shape: f32[8,128], index: 2, kind: output, shape index: {}]
  %s3 = sld [smem:[#allocation0]]
  $region26: #{tpu_custom_call.1} parent=0
    _
  %s5 = ssub.s32 1, %s3
  %s6 = scalar_select 0, %s5, %s3
  $region1: #{tpu_custom_call.1} parent=0
    #allocation2 [shape = 'u8[512]{0}', space=smem, size = 0x200, scoped, tag = 'input window, operand 0, single buffered']
    #allocation3 [shape = 's32[1]{0}', space=sflag, size = 0x4, scoped, tag = 'scoped memory for tpu_custom_call.1']
    #allocation4 [shape = 's32[1]{0}', space=sflag, size = 0x4, scoped, tag = 'scoped memory for tpu_custom_call.1']
    #allocation5 [shape = 's32[1]{0}', space=sflag, size = 0x4, scoped, tag = 'scoped memory for tpu_custom_call.1']
    #allocation6 [shape = 'u8[4096]{0}', space=vmem, size = 0x1000, scoped, tag = 'input window, operand 1, single buffered']
    #allocation7 [shape = 'u8[4096]{0}', space=vmem, size = 0x1000, scoped, tag = 'output window, operand 0, single buffered']
    %7 = vsyncpa [#allocation5], 0
    %8 = vsyncpa [#allocation3], 0
    %9 = vsyncpa [#allocation4], 0
    // Predicated region
    $region2: #{tpu_custom_call.1} parent=1 // pred_check
      _
    $region3: #{tpu_custom_call.1} parent=1 // pred_check_branch
      %11 = sbr.rel (0) target = $region5
    $region4: #{tpu_custom_call.1} parent=1 // pred_region
      %s13 = ssub.s32 16, 16
      %14 = vsyncadd [#allocation5], %s13
      %17 = dma.hbm_to_smem %s0, 16, [#allocation2], [#allocation5]
    $region5: #{tpu_custom_call.1} parent=1 // pred_fallthru
      _
    // Predicated region
    $region6: #{tpu_custom_call.1} parent=1 // pred_check
      _
    $region7: #{tpu_custom_call.1} parent=1 // pred_check_branch
      %19 = sbr.rel (0) target = $region9
    $region8: #{tpu_custom_call.1} parent=1 // pred_region
      %s21 = ssub.s32 128, 128
      %22 = vsyncadd [#allocation3], %s21
      %s24 = sshll.u32 [#allocation6], 4
      %s25 = int_to_ptr.vmem [resolvable:$true] %s24
      %27 = dma.hbm_to_vmem [thread:$0]  %s1, 128, %s25, [#allocation3]
    $region9: #{tpu_custom_call.1} parent=1 // pred_fallthru
      _
    // Predicated region
    $region10: #{tpu_custom_call.1} parent=1 // pred_check
      _
    $region11: #{tpu_custom_call.1} parent=1 // pred_check_branch
      %29 = sbr.rel (0) target = $region13
    $region12: #{tpu_custom_call.1} parent=1 // pred_region
      %30 = dma.done [#allocation5], 16
    $region13: #{tpu_custom_call.1} parent=1 // pred_fallthru
      _
    // Predicated region
    $region14: #{tpu_custom_call.1} parent=1 // pred_check
      _
    $region15: #{tpu_custom_call.1} parent=1 // pred_check_branch
      %32 = sbr.rel (0) target = $region17
    $region16: #{tpu_custom_call.1} parent=1 // pred_region
      %33 = dma.done [#allocation3], 128
    $region17: #{tpu_custom_call.1} parent=1 // pred_fallthru
      _
    %34 = sfence
    %v35 = vld [vmem:[#allocation6] sm:$0xff]
    %v36 = vand.u32 2147483647, %v35
    %vm37 = vcmp.le.f32.partialorder %v36, 3.1415927
    %v38 = vadd.f32 %v35, 3.1415927
    %v39 = vmul.f32 %v38, 0.15915494
    %v40 = vfloor.f32 %v39
    %v41 = vmul.f32 %v40, 6.2831855
    %v42 = vsub.f32 %v35, %v41
    %vm43 = vcmp.gt.f32.partialorder %v35, 3.1415927
    %vm44 = vcmp.le.f32.partialorder %v42, -3.1415927
    %vm45 = vmand %vm43, %vm44
    %v46 = vsel %vm45, 6.2831855, 0.0
    %v47 = vadd.f32 %v42, %v46
    %v48 = vsel %vm37, %v35, %v47
    %s49 = sld [smem:[#allocation2 + $0x1e]]
    %v50 = vstv %s49
    %s51 = sld [smem:[#allocation2]]
    %s52 = sld [smem:[#allocation2 + $0xa]]
    %s53 = sld [smem:[#allocation2 + $0x14]]
    %v54 = vstv %s51
    %v55 = vmul.f32 %v48, %v54
    %v56 = vstv %s52
    %v57 = vadd.f32 %v55, %v56
    %v58 = vtanh.pop %v57
    %v59 = vstv %s53
    %v60 = vmul.f32 %v58, %v59
    %v61 = vadd.f32 %v50, %v60
    %s62 = sld [smem:[#allocation2 + $0x1]]
    %s63 = sld [smem:[#allocation2 + $0xb]]
    %s64 = sld [smem:[#allocation2 + $0x15]]
    %v65 = vstv %s62
    %v66 = vmul.f32 %v48, %v65
    %v67 = vstv %s63
    %v68 = vadd.f32 %v66, %v67
    %v69 = vtanh.pop %v68
    %v70 = vstv %s64
    %v71 = vmul.f32 %v69, %v70
    %v72 = vadd.f32 %v61, %v71
    %s73 = sld [smem:[#allocation2 + $0x2]]
    %s74 = sld [smem:[#allocation2 + $0xc]]
    %s75 = sld [smem:[#allocation2 + $0x16]]
    %v76 = vstv %s73
    %v77 = vmul.f32 %v48, %v76
    %v78 = vstv %s74
    %v79 = vadd.f32 %v77, %v78
    %v80 = vtanh.pop %v79
    %v81 = vstv %s75
    %v82 = vmul.f32 %v80, %v81
    %v83 = vadd.f32 %v72, %v82
    %s84 = sld [smem:[#allocation2 + $0x3]]
    %s85 = sld [smem:[#allocation2 + $0xd]]
    %s86 = sld [smem:[#allocation2 + $0x17]]
    %v87 = vstv %s84
    %v88 = vmul.f32 %v48, %v87
    %v89 = vstv %s85
    %v90 = vadd.f32 %v88, %v89
    %v91 = vtanh.pop %v90
    %v92 = vstv %s86
    %v93 = vmul.f32 %v91, %v92
    %v94 = vadd.f32 %v83, %v93
    %s95 = sld [smem:[#allocation2 + $0x4]]
    %s96 = sld [smem:[#allocation2 + $0xe]]
    %s97 = sld [smem:[#allocation2 + $0x18]]
    %v98 = vstv %s95
    %v99 = vmul.f32 %v48, %v98
    %v100 = vstv %s96
    %v101 = vadd.f32 %v99, %v100
    %v102 = vtanh.pop %v101
    %v103 = vstv %s97
    %v104 = vmul.f32 %v102, %v103
    %v105 = vadd.f32 %v94, %v104
    %s106 = sld [smem:[#allocation2 + $0x5]]
    %s107 = sld [smem:[#allocation2 + $0xf]]
    %s108 = sld [smem:[#allocation2 + $0x19]]
    %v109 = vstv %s106
    %v110 = vmul.f32 %v48, %v109
    %v111 = vstv %s107
    %v112 = vadd.f32 %v110, %v111
    %v113 = vtanh.pop %v112
    %v114 = vstv %s108
    %v115 = vmul.f32 %v113, %v114
    %v116 = vadd.f32 %v105, %v115
    %s117 = sld [smem:[#allocation2 + $0x6]]
    %s118 = sld [smem:[#allocation2 + $0x10]]
    %s119 = sld [smem:[#allocation2 + $0x1a]]
    %v120 = vstv %s117
    %v121 = vmul.f32 %v48, %v120
    %v122 = vstv %s118
    %v123 = vadd.f32 %v121, %v122
    %v124 = vtanh.pop %v123
    %v125 = vstv %s119
    %v126 = vmul.f32 %v124, %v125
    %v127 = vadd.f32 %v116, %v126
    %s128 = sld [smem:[#allocation2 + $0x7]]
    %s129 = sld [smem:[#allocation2 + $0x11]]
    %s130 = sld [smem:[#allocation2 + $0x1b]]
    %v131 = vstv %s128
    %v132 = vmul.f32 %v48, %v131
    %v133 = vstv %s129
    %v134 = vadd.f32 %v132, %v133
    %v135 = vtanh.pop %v134
    %v136 = vstv %s130
    %v137 = vmul.f32 %v135, %v136
    %v138 = vadd.f32 %v127, %v137
    %s139 = sld [smem:[#allocation2 + $0x8]]
    %s140 = sld [smem:[#allocation2 + $0x12]]
    %s141 = sld [smem:[#allocation2 + $0x1c]]
    %v142 = vstv %s139
    %v143 = vmul.f32 %v48, %v142
    %v144 = vstv %s140
    %v145 = vadd.f32 %v143, %v144
    %v146 = vtanh.pop %v145
    %v147 = vstv %s141
    %v148 = vmul.f32 %v146, %v147
    %v149 = vadd.f32 %v138, %v148
    %s150 = sld [smem:[#allocation2 + $0x9]]
    %s151 = sld [smem:[#allocation2 + $0x13]]
    %s152 = sld [smem:[#allocation2 + $0x1d]]
    %v153 = vstv %s150
    %v154 = vmul.f32 %v48, %v153
    %v155 = vstv %s151
    %v156 = vadd.f32 %v154, %v155
    %v157 = vtanh.pop %v156
    %v158 = vstv %s152
    %v159 = vmul.f32 %v157, %v158
    %v160 = vadd.f32 %v149, %v159
    %161 = vst [vmem:[#allocation7] sm:$0xff] %v160
    // Predicated region
    $region18: #{tpu_custom_call.1} parent=1 // pred_check
      _
    $region19: #{tpu_custom_call.1} parent=1 // pred_check_branch
      %163 = sbr.rel (0) target = $region21
    $region20: #{tpu_custom_call.1} parent=1 // pred_region
      %s165 = ssub.s32 128, 128
      %166 = vsyncadd [#allocation4], %s165
      %s168 = sshll.u32 [#allocation7], 4
      %s169 = int_to_ptr.vmem [resolvable:$true] %s168
      %171 = dma.vmem_to_hbm [thread:$0]  %s169, 128, %s2, [#allocation4]
    $region21: #{tpu_custom_call.1} parent=1 // pred_fallthru
      _
    // Predicated region
    $region22: #{tpu_custom_call.1} parent=1 // pred_check
      _
    $region23: #{tpu_custom_call.1} parent=1 // pred_check_branch
      %173 = sbr.rel (0) target = $region25
    $region24: #{tpu_custom_call.1} parent=1 // pred_region
      %174 = dma.done [#allocation4], 128
    $region25: #{tpu_custom_call.1} parent=1 // pred_fallthru
      _
    %175 = vsyncpa [#allocation3], 1
    %176 = vsyncpa [#allocation4], 1
    %177 = vsyncpa [#allocation5], 1

</llo_original>
